<compile_context>
chip_gen: v5e
topology: v5e:2x2
jax: 0.10.0
libtpu: 0.0.40
codegen_flags: <defaults>
</compile_context>

<pallas_src>
import functools

import numpy as np
import jax
import jax.numpy as jnp
from jax import lax
from jax.experimental import pallas as pl
from jax.experimental.pallas import tpu as pltpu


def _cdiv(a, b):
    return -(-a // b)


def _round_up(x, m):
    return _cdiv(x, m) * m


def _pairwise_reg_kernel(rb_ref, cb_ref, wt_ref,          # SMEM prefetch
                         z_row_ref, z_col_ref,             # VMEM (t, D)
                         zsq_row_ref, zsq_col_ref,         # VMEM (t,1)/(1,t) f32
                         out_ref,                          # VMEM (1, 8, 128) f32
                         acc_ref,                          # VMEM (1, 1) f32 scratch
                         *, q_steps, use_bf16_log):
    p = pl.program_id(0)
    q = pl.program_id(1)

    @pl.when(q == 0)
    def _():
        acc_ref[...] = jnp.zeros_like(acc_ref)

    # Gram tile on the MXU, contracting the hidden dim of both operands
    # (A @ B.T without an explicit in-kernel transpose); f32 accumulation.
    gram = lax.dot_general(
        z_row_ref[...], z_col_ref[...],
        dimension_numbers=(((1,), (1,)), ((), ())),
        preferred_element_type=jnp.float32)                       # (t, t)

    # Padded rows/cols carry zsq = -1e30, so after the clamp they contribute
    # log(1 + 0) = 0 and no explicit mask is needed.
    dists = jnp.maximum(zsq_row_ref[...] + zsq_col_ref[...] - 2.0 * gram, 0.0)

    if use_bf16_log:
        # v6e/v7x only: EUP bf16 path ~2x faster; ~3 significant digits/term.
        reg_tile = jnp.log(1.0 + dists.astype(jnp.bfloat16)).astype(jnp.float32)
    else:
        reg_tile = jnp.log(1.0 + dists)

    # Tile weight: 1.0 diagonal block, 2.0 off-diagonal (symmetry), 0.0 dummy.
    w = wt_ref[p * q_steps + q]
    acc_ref[...] += w * jnp.sum(reg_tile)

    @pl.when(q == q_steps - 1)
    def _():
        val = jnp.sum(acc_ref[...])
        sub0 = lax.broadcasted_iota(jnp.int32, out_ref.shape, 1) == 0
        lane0 = lax.broadcasted_iota(jnp.int32, out_ref.shape, 2) == 0
        out_ref[...] = jnp.where(sub0 & lane0, val, 0.0)


def _recon_term(Z, Z_prev):
    """F.normalize(p=2, dim=-1, eps=1e-12) + F.mse_loss, in plain XLA."""
    eps = jnp.float32(1e-12)
    z = Z.astype(jnp.float32)
    zp = Z_prev.astype(jnp.float32)
    zn = z / jnp.maximum(jnp.linalg.norm(z, axis=-1, keepdims=True), eps)
    zpn = zp / jnp.maximum(jnp.linalg.norm(zp, axis=-1, keepdims=True), eps)
    return jnp.mean((zn - zpn) ** 2)


def improved_energy_function(Z, Z_prev, *, adaptive_weight, scale_factor,
                             lambda_reg=1.0, epoch=None, block=512,
                             use_bf16_log=False, xla_fastpath_max_n=64):
    """Pallas equivalent of ImprovedEnergyFunction.forward. Returns f32 scalar."""
    N, D = Z.shape
    assert Z_prev.shape == (N, D)

    # lambda schedule stays host-side, like the torch module.
    if epoch is not None:
        current_lambda = lambda_reg * min(1.0, epoch / 50)
    else:
        current_lambda = lambda_reg

    c_reg = (jnp.asarray(current_lambda, jnp.float32).reshape(())
             * jnp.asarray(adaptive_weight, jnp.float32).reshape(())
             * jnp.asarray(scale_factor, jnp.float32).reshape(()))

    recon = _recon_term(Z, Z_prev)

    # ---- XLA fast path for tiny graphs (pallas_call launch cost dominates) --
    if N <= xla_fastpath_max_n:
        z32 = Z.astype(jnp.float32)
        zsq = jnp.sum(z32 * z32, axis=-1, keepdims=True)
        dists = jnp.maximum(zsq + zsq.T - 2.0 * (z32 @ z32.T), 0.0)
        reg_mean = jnp.mean(jnp.log(1.0 + dists))
        return (recon + c_reg * reg_mean).astype(jnp.float32)

    # ---- tile size / padding --------------------------------------------------
    block = _round_up(max(int(block), 128), 128)
    if N <= 128:
        t = _round_up(max(N, 1), 8)            # single square tile
    else:
        # multiple of 128, aim for >= 4 row blocks (megacore balance, low pad waste)
        t = max(128, min(block, _round_up(_cdiv(N, 4), 128)))
        # cap so double-buffered operand tiles + f32 intermediates stay << 32 MiB
        itemsize = jnp.dtype(Z.dtype).itemsize
        while t > 128 and (4 * t * D * itemsize + 4 * t * t * 4) > (24 << 20):
            t = max(128, (t // 2) // 128 * 128)

    n_pad = _round_up(N, t)
    gm = n_pad // t
    pad = n_pad - N

    if pad:
        Z_p = jnp.pad(Z, ((0, pad), (0, 0)))
    else:
        Z_p = Z

    # Squared row norms once, f32, supplied in both layouts (no in-kernel
    # transpose, no per-column-tile recomputation).  Padded rows poisoned with
    # -1e30 so they vanish under clamp+log (replaces the per-element mask).
    z32 = Z_p.astype(jnp.float32)
    z_sq = jnp.sum(z32 * z32, axis=-1)
    if pad:
        z_sq = jnp.where(jnp.arange(n_pad) < N, z_sq, jnp.float32(-1e30))
    zsq_rows = z_sq.reshape(n_pad, 1)
    zsq_cols = z_sq.reshape(1, n_pad)

    # ---- block-upper-triangle pair list (symmetry: ~2x fewer tiles) ----------
    pairs = [(i, j) for i in range(gm) for j in range(i, gm)]
    T = len(pairs)                       # gm*(gm+1)/2
    P = 2 if T >= 2 else 1               # v7x: 2 TCs; harmless elsewhere
    Q = _cdiv(T, P)
    T_pad = P * Q
    rb = np.zeros((T_pad,), np.int32)
    cb = np.zeros((T_pad,), np.int32)
    wt = np.zeros((T_pad,), np.float32)  # dummy pairs keep weight 0
    for s, (i, j) in enumerate(pairs):
        rb[s] = i
        cb[s] = j
        wt[s] = 1.0 if i == j else 2.0
    rb_arr = jnp.asarray(rb)
    cb_arr = jnp.asarray(cb)
    wt_arr = jnp.asarray(wt)

    kernel = functools.partial(_pairwise_reg_kernel, q_steps=Q,
                               use_bf16_log=use_bf16_log)

    partials = pl.pallas_call(
        kernel,
        out_shape=jax.ShapeDtypeStruct((P, 8, 128), jnp.float32),
        grid_spec=pltpu.PrefetchScalarGridSpec(
            num_scalar_prefetch=3,
            grid=(P, Q),
            in_specs=[
                pl.BlockSpec((t, D), lambda p, q, rb, cb, wt: (rb[p * Q + q], 0)),
                pl.BlockSpec((t, D), lambda p, q, rb, cb, wt: (cb[p * Q + q], 0)),
                pl.BlockSpec((t, 1), lambda p, q, rb, cb, wt: (rb[p * Q + q], 0)),
                pl.BlockSpec((1, t), lambda p, q, rb, cb, wt: (0, cb[p * Q + q])),
            ],
            out_specs=pl.BlockSpec((1, 8, 128), lambda p, q, rb, cb, wt: (p, 0, 0)),
            scratch_shapes=[pltpu.VMEM((1, 1), jnp.float32)],
        ),
        compiler_params=pltpu.CompilerParams(
            dimension_semantics=("parallel", "arbitrary"),
            vmem_limit_bytes=32 * 1024 * 1024),
    )(rb_arr, cb_arr, wt_arr, Z_p, Z_p, zsq_rows, zsq_cols)

    # Each partition's block holds its partial at [0,0] and zeros elsewhere.
    reg_mean = jnp.sum(partials) / jnp.float32(N * N)
    return (recon + c_reg * reg_mean).astype(jnp.float32)


def _reference(Z, Z_prev, adaptive_weight, scale_factor, lambda_reg, epoch):
    Z = Z.astype(jnp.float32)
    Zp = Z_prev.astype(jnp.float32)
    eps = 1e-12
    Zn = Z / jnp.maximum(jnp.linalg.norm(Z, axis=-1, keepdims=True), eps)
    Zpn = Zp / jnp.maximum(jnp.linalg.norm(Zp, axis=-1, keepdims=True), eps)
    recon = jnp.mean((Zn - Zpn) ** 2)
    z_sq = jnp.sum(Z * Z, axis=-1, keepdims=True)
    dists = z_sq + z_sq.T - 2.0 * (Z @ Z.T)
    dists = jnp.clip(dists, 0.0, None)
    reg = jnp.mean(scale_factor * jnp.log(1.0 + dists))
    cur_lambda = lambda_reg * (min(1.0, epoch / 50) if epoch is not None else 1.0)
    return recon + cur_lambda * adaptive_weight * reg


if __name__ == "__main__":
    key = jax.random.PRNGKey(0)
    k1, k2, k3, k4, k5, k6 = jax.random.split(key, 6)

    # Case 1: module-sized inputs (N=8 nodes, hidden_dim=32), default params
    # (the module __init__ uses torch.ones(1) for both).  Force the Pallas
    # path (single-tile grid) even though the XLA fast path would take it.
    N1, D1 = 8, 32
    Z1 = jax.random.normal(k1, (N1, D1), dtype=jnp.float32)
    Zp1 = jax.random.normal(k2, (N1, D1), dtype=jnp.float32)
    out1 = improved_energy_function(
        Z1, Zp1, adaptive_weight=1.0, scale_factor=1.0,
        lambda_reg=1.0, epoch=None, xla_fastpath_max_n=0)
    out1 = jax.block_until_ready(out1)
    ref1 = _reference(Z1, Zp1, 1.0, 1.0, 1.0, None)
    assert jnp.allclose(out1, ref1, rtol=1e-4, atol=1e-4), (out1, ref1)

    # Case 1b: default small-N XLA fast path gives the same answer.
    out1b = jax.block_until_ready(improved_energy_function(
        Z1, Zp1, adaptive_weight=1.0, scale_factor=1.0, lambda_reg=1.0, epoch=None))
    assert jnp.allclose(out1b, ref1, rtol=1e-4, atol=1e-4), (out1b, ref1)

    # Case 2: padding + symmetry pair list + 2-partition grid (t=128, gm=2),
    # non-trivial params and the epoch lambda schedule.
    N2, D2 = 200, 32
    Z2 = jax.random.normal(k3, (N2, D2), dtype=jnp.float32)
    Zp2 = jax.random.normal(k4, (N2, D2), dtype=jnp.float32)
    out2 = improved_energy_function(
        Z2, Zp2, adaptive_weight=0.7, scale_factor=1.3,
        lambda_reg=2.0, epoch=10)
    out2 = jax.block_until_ready(out2)
    ref2 = _reference(Z2, Zp2, 0.7, 1.3, 2.0, 10)
    assert jnp.allclose(out2, ref2, rtol=2e-4, atol=2e-4), (out2, ref2)

    # Case 3: more row blocks (gm=6), odd pair count -> one dummy padding pair.
    N3, D3 = 700, 64
    Z3 = jax.random.normal(k5, (N3, D3), dtype=jnp.float32)
    Zp3 = jax.random.normal(k6, (N3, D3), dtype=jnp.float32)
    out3 = improved_energy_function(
        Z3, Zp3, adaptive_weight=1.1, scale_factor=0.9,
        lambda_reg=1.5, epoch=100, block=128)
    out3 = jax.block_until_ready(out3)
    ref3 = _reference(Z3, Zp3, 1.1, 0.9, 1.5, 100)
    assert jnp.allclose(out3, ref3, rtol=2e-4, atol=2e-4), (out3, ref3)

    print("KERNEL_OK")
</pallas_src>

<mosaic_0001>
module attributes {stable_mosaic.version = 11 : i64} {
  func.func @_pairwise_reg_kernel(%arg0: i32, %arg1: i32, %arg2: memref<1xi32, #tpu.memory_space<smem>>, %arg3: memref<1xi32, #tpu.memory_space<smem>>, %arg4: memref<1xf32, #tpu.memory_space<smem>>, %arg5: memref<8x32xf32, #tpu.memory_space<vmem>>, %arg6: memref<8x32xf32, #tpu.memory_space<vmem>>, %arg7: memref<8x1xf32, #tpu.memory_space<vmem>>, %arg8: memref<1x8xf32, #tpu.memory_space<vmem>>, %arg9: memref<1x8x128xf32, #tpu.memory_space<vmem>>, %arg10: memref<1x1xf32, #tpu.memory_space<vmem>>) attributes {dimension_semantics = [#tpu.dimension_semantics<parallel>, #tpu.dimension_semantics<arbitrary>], iteration_bounds = array<i64: 1, 1>, scalar_prefetch = 3 : i64, scratch_operands = 1 : i64, tpu.core_type = #tpu.core_type<tc>, window_params = [{transform_indices = @transform_0, window_bounds = array<i64: 8, 32>}, {transform_indices = @transform_1, window_bounds = array<i64: 8, 32>}, {transform_indices = @transform_2, window_bounds = array<i64: 8, 1>}, {transform_indices = @transform_3, window_bounds = array<i64: 1, 8>}, {transform_indices = @transform_4, window_bounds = array<i64: 1, 8, 128>}]} {
    %c0_i32 = arith.constant 0 : i32
    %0 = arith.cmpi eq, %arg1, %c0_i32 : i32
    %1 = arith.extui %0 : i1 to i32
    %c0_i32_0 = arith.constant 0 : i32
    %2 = arith.cmpi ne, %1, %c0_i32_0 : i32
    scf.if %2 {
      %cst_18 = arith.constant 0.000000e+00 : f32
      %35 = vector.broadcast %cst_18 : f32 to vector<1x1xf32>
      %c0_19 = arith.constant 0 : index
      %c0_20 = arith.constant 0 : index
      %36 = vector.load %arg10[%c0_19, %c0_20] : memref<1x1xf32, #tpu.memory_space<vmem>>, vector<1x1xf32>
      tpu.vector_store %arg10[%c0_19, %c0_20], %35 {strides = array<i32>} : memref<1x1xf32, #tpu.memory_space<vmem>>, vector<1x1xf32>,
    } else {
    }
    %c0 = arith.constant 0 : index
    %c0_1 = arith.constant 0 : index
    %3 = vector.load %arg5[%c0, %c0_1] : memref<8x32xf32, #tpu.memory_space<vmem>>, vector<8x32xf32>
    %c0_2 = arith.constant 0 : index
    %c0_3 = arith.constant 0 : index
    %4 = vector.load %arg6[%c0_2, %c0_3] : memref<8x32xf32, #tpu.memory_space<vmem>>, vector<8x32xf32>
    %cst = arith.constant dense<0.000000e+00> : vector<8x8xf32>
    %5 = tpu.matmul %3, %4, %cst {dimension_numbers = #tpu.dot_dimension_numbers<[1], [1], [0], [0], [0, 0, 1, 0], [], []>} : vector<8x32xf32>, vector<8x32xf32>, vector<8x8xf32> -> vector<8x8xf32>
    %c0_4 = arith.constant 0 : index
    %c0_5 = arith.constant 0 : index
    %6 = vector.load %arg7[%c0_4, %c0_5] : memref<8x1xf32, #tpu.memory_space<vmem>>, vector<8x1xf32>
    %c0_6 = arith.constant 0 : index
    %c0_7 = arith.constant 0 : index
    %7 = vector.load %arg8[%c0_6, %c0_7] : memref<1x8xf32, #tpu.memory_space<vmem>>, vector<1x8xf32>
    %8 = vector.broadcast %6 : vector<8x1xf32> to vector<8x8xf32>
    %9 = vector.broadcast %7 : vector<1x8xf32> to vector<8x8xf32>
    %10 = arith.addf %8, %9 : vector<8x8xf32>
    %cst_8 = arith.constant 2.000000e+00 : f32
    %11 = vector.broadcast %cst_8 : f32 to vector<8x8xf32>
    %12 = arith.mulf %11, %5 : vector<8x8xf32>
    %13 = arith.subf %10, %12 : vector<8x8xf32>
    %cst_9 = arith.constant 0.000000e+00 : f32
    %14 = vector.broadcast %cst_9 : f32 to vector<8x8xf32>
    %15 = arith.maximumf %13, %14 : vector<8x8xf32>
    %cst_10 = arith.constant 1.000000e+00 : f32
    %16 = vector.broadcast %cst_10 : f32 to vector<8x8xf32>
    %17 = arith.addf %16, %15 : vector<8x8xf32>
    %18 = math.log %17 : vector<8x8xf32>
    %c1_i32 = arith.constant 1 : i32
    %19 = arith.muli %arg0, %c1_i32 : i32
    %20 = arith.addi %19, %arg1 : i32
    %21 = arith.index_cast %20 : i32 to index
    %22 = memref.load %arg4[%21] : memref<1xf32, #tpu.memory_space<smem>>
    %c0_11 = arith.constant 0 : index
    %c0_12 = arith.constant 0 : index
    %23 = vector.load %arg10[%c0_11, %c0_12] : memref<1x1xf32, #tpu.memory_space<vmem>>, vector<1x1xf32>
    %24 = vector.shape_cast %18 : vector<8x8xf32> to vector<1x8x8xf32>
    %cst_13 = arith.constant dense<0.000000e+00> : vector<1xf32>
    %25 = vector.multi_reduction <add>, %24, %cst_13 [1, 2] : vector<1x8x8xf32> to vector<1xf32>
    %26 = vector.shape_cast %25 : vector<1xf32> to vector<1x1x1xf32>
    %27 = vector.extract %26[0, 0, 0] : f32 from vector<1x1x1xf32>
    %28 = arith.mulf %22, %27 : f32
    %29 = vector.broadcast %28 : f32 to vector<1x1xf32>
    %30 = arith.addf %23, %29 : vector<1x1xf32>
    %c0_14 = arith.constant 0 : index
    %c0_15 = arith.constant 0 : index
    %31 = vector.load %arg10[%c0_14, %c0_15] : memref<1x1xf32, #tpu.memory_space<vmem>>, vector<1x1xf32>
    tpu.vector_store %arg10[%c0_14, %c0_15], %30 {strides = array<i32>} : memref<1x1xf32, #tpu.memory_space<vmem>>, vector<1x1xf32>,
    %c0_i32_16 = arith.constant 0 : i32
    %32 = arith.cmpi eq, %arg1, %c0_i32_16 : i32
    %33 = arith.extui %32 : i1 to i32
    %c0_i32_17 = arith.constant 0 : i32
    %34 = arith.cmpi ne, %33, %c0_i32_17 : i32
    scf.if %34 {
      %c0_18 = arith.constant 0 : index
      %c0_19 = arith.constant 0 : index
      %35 = vector.load %arg10[%c0_18, %c0_19] : memref<1x1xf32, #tpu.memory_space<vmem>>, vector<1x1xf32>
      %36 = vector.shape_cast %35 : vector<1x1xf32> to vector<1x1x1xf32>
      %cst_20 = arith.constant dense<0.000000e+00> : vector<1xf32>
      %37 = vector.multi_reduction <add>, %36, %cst_20 [1, 2] : vector<1x1x1xf32> to vector<1xf32>
      %38 = vector.shape_cast %37 : vector<1xf32> to vector<1x1x1xf32>
      %39 = vector.extract %38[0, 0, 0] : f32 from vector<1x1x1xf32>
      %40 = tpu.iota {dimensions = array<i32: 1>} : vector<1x8x128xi32>
      %c0_i32_21 = arith.constant 0 : i32
      %41 = vector.broadcast %c0_i32_21 : i32 to vector<1x8x128xi32>
      %42 = arith.cmpi eq, %40, %41 : vector<1x8x128xi32>
      %43 = tpu.iota {dimensions = array<i32: 2>} : vector<1x8x128xi32>
      %c0_i32_22 = arith.constant 0 : i32
      %44 = vector.broadcast %c0_i32_22 : i32 to vector<1x8x128xi32>
      %45 = arith.cmpi eq, %43, %44 : vector<1x8x128xi32>
      %46 = arith.andi %42, %45 : vector<1x8x128xi1>
      %cst_23 = arith.constant 0.000000e+00 : f32
      %47 = vector.broadcast %39 : f32 to vector<1x8x128xf32>
      %48 = vector.broadcast %cst_23 : f32 to vector<1x8x128xf32>
      %49 = arith.select %46, %47, %48 : vector<1x8x128xi1>, vector<1x8x128xf32>
      %c0_24 = arith.constant 0 : index
      %c0_25 = arith.constant 0 : index
      %c0_26 = arith.constant 0 : index
      %50 = vector.load %arg9[%c0_24, %c0_25, %c0_26] : memref<1x8x128xf32, #tpu.memory_space<vmem>>, vector<1x8x128xf32>
      tpu.vector_store %arg9[%c0_24, %c0_25, %c0_26], %49 {strides = array<i32>} : memref<1x8x128xf32, #tpu.memory_space<vmem>>, vector<1x8x128xf32>,
    } else {
    }
    return
  }
  func.func @transform_0(%arg0: i32, %arg1: i32, %arg2: memref<1xi32, #tpu.memory_space<smem>>, %arg3: memref<1xi32, #tpu.memory_space<smem>>, %arg4: memref<1xf32, #tpu.memory_space<smem>>) -> (i32, i32) {
    %c1_i32 = arith.constant 1 : i32
    %0 = arith.muli %arg0, %c1_i32 : i32
    %1 = arith.addi %0, %arg1 : i32
    %2 = arith.index_cast %1 : i32 to index
    %3 = memref.load %arg2[%2] : memref<1xi32, #tpu.memory_space<smem>>
    %c0_i32 = arith.constant 0 : i32
    %c0_i32_0 = arith.constant 0 : i32
    return %3, %c0_i32 : i32, i32
  }
  func.func @transform_1(%arg0: i32, %arg1: i32, %arg2: memref<1xi32, #tpu.memory_space<smem>>, %arg3: memref<1xi32, #tpu.memory_space<smem>>, %arg4: memref<1xf32, #tpu.memory_space<smem>>) -> (i32, i32) {
    %c1_i32 = arith.constant 1 : i32
    %0 = arith.muli %arg0, %c1_i32 : i32
    %1 = arith.addi %0, %arg1 : i32
    %2 = arith.index_cast %1 : i32 to index
    %3 = memref.load %arg3[%2] : memref<1xi32, #tpu.memory_space<smem>>
    %c0_i32 = arith.constant 0 : i32
    %c0_i32_0 = arith.constant 0 : i32
    return %3, %c0_i32 : i32, i32
  }
  func.func @transform_2(%arg0: i32, %arg1: i32, %arg2: memref<1xi32, #tpu.memory_space<smem>>, %arg3: memref<1xi32, #tpu.memory_space<smem>>, %arg4: memref<1xf32, #tpu.memory_space<smem>>) -> (i32, i32) {
    %c1_i32 = arith.constant 1 : i32
    %0 = arith.muli %arg0, %c1_i32 : i32
    %1 = arith.addi %0, %arg1 : i32
    %2 = arith.index_cast %1 : i32 to index
    %3 = memref.load %arg2[%2] : memref<1xi32, #tpu.memory_space<smem>>
    %c0_i32 = arith.constant 0 : i32
    %c0_i32_0 = arith.constant 0 : i32
    return %3, %c0_i32 : i32, i32
  }
  func.func @transform_3(%arg0: i32, %arg1: i32, %arg2: memref<1xi32, #tpu.memory_space<smem>>, %arg3: memref<1xi32, #tpu.memory_space<smem>>, %arg4: memref<1xf32, #tpu.memory_space<smem>>) -> (i32, i32) {
    %c1_i32 = arith.constant 1 : i32
    %0 = arith.muli %arg0, %c1_i32 : i32
    %1 = arith.addi %0, %arg1 : i32
    %2 = arith.index_cast %1 : i32 to index
    %3 = memref.load %arg3[%2] : memref<1xi32, #tpu.memory_space<smem>>
    %c0_i32 = arith.constant 0 : i32
    %c0_i32_0 = arith.constant 0 : i32
    return %c0_i32, %3 : i32, i32
  }
  func.func @transform_4(%arg0: i32, %arg1: i32, %arg2: memref<1xi32, #tpu.memory_space<smem>>, %arg3: memref<1xi32, #tpu.memory_space<smem>>, %arg4: memref<1xf32, #tpu.memory_space<smem>>) -> (i32, i32, i32) {
    %c0_i32 = arith.constant 0 : i32
    %c0_i32_0 = arith.constant 0 : i32
    %c0_i32_1 = arith.constant 0 : i32
    return %arg0, %c0_i32, %c0_i32_0 : i32, i32, i32
  }
}

</mosaic_0001>

<llo_original>
// kernel: tpu_custom_call.1
$region0: #{tpu_custom_call.1}
  #allocation0 [shape = 'u32[]', space=smem, size = 0x4, offset = 0x4, fixed_abs, tag = 'smem constant byte address 0x4 - core index']
  #allocation1 [shape = 'u32[72,128]{1,0:T(1,128)}', space=vmem, size = 0x9000, scoped, tag = 'internal scratch']
  #allocation2 [shape = 'f32[1,1]{1,0:T(1,128)}', space=vmem, size = 0x200, scoped, tag = 'scratch operand']
  #allocation3 [shape = 's32[1]{0}', space=sflag, size = 0x4, scoped, tag = 'scoped memory for tpu_custom_call.1']
  #allocation4 [shape = 's32[1]{0:T(128)S(6)}', space=smem, size = 0x200, scoped, tag = 'prefetched SMEM operand 0']
  #allocation5 [shape = 's32[1]{0:T(128)S(6)}', space=smem, size = 0x200, scoped, tag = 'prefetched SMEM operand 1']
  #allocation6 [shape = 'f32[1]{0:T(128)S(6)}', space=smem, size = 0x200, scoped, tag = 'prefetched SMEM operand 2']
  %s0 = inlined_call_operand.<no memory space> [shape: s32[1], index: 0, kind: input, shape index: {}]
  %s1 = inlined_call_operand.<no memory space> [shape: s32[1], index: 1, kind: input, shape index: {}]
  %s2 = inlined_call_operand.<no memory space> [shape: f32[1], index: 2, kind: input, shape index: {}]
  %s3 = inlined_call_operand.vmem [shape: f32[8,32], index: 3, kind: input, shape index: {}]
  %s4 = inlined_call_operand.hbm [shape: f32[8,32], index: 4, kind: input, shape index: {}]
  %s5 = inlined_call_operand.vmem [shape: f32[8,1], index: 5, kind: input, shape index: {}]
  %s6 = inlined_call_operand.vmem [shape: f32[1,8], index: 6, kind: input, shape index: {}]
  %s7 = inlined_call_operand.hbm [shape: f32[1,8,128], index: 7, kind: output, shape index: {}]
  %s8 = sld [smem:[#allocation0]]
  $region38: #{tpu_custom_call.1} parent=0
    _
  %s10 = ssub.s32 1, %s8
  %s11 = scalar_select 0, %s10, %s8
  %12 = sst [smem:[#allocation4]] %s0
  %13 = sst [smem:[#allocation5]] %s1
  %14 = sst [smem:[#allocation6]] %s2
  $region1: #{tpu_custom_call.1} parent=0
    #allocation7 [shape = 'u8[4096]{0}', space=vmem, size = 0x1000, scoped, tag = 'input window, operand 4, single buffered']
    #allocation8 [shape = 's32[1]{0}', space=sflag, size = 0x4, scoped, tag = 'scoped memory for tpu_custom_call.1']
    #allocation9 [shape = 's32[1]{0}', space=sflag, size = 0x4, scoped, tag = 'scoped memory for tpu_custom_call.1']
    #allocation10 [shape = 'u8[4096]{0}', space=vmem, size = 0x1000, scoped, tag = 'output window, operand 0, single buffered']
    %15 = vsyncpa [#allocation8], 0
    %16 = vsyncpa [#allocation9], 0
    // Predicated region
    $region2: #{tpu_custom_call.1} parent=1 // pred_check
      _
    $region3: #{tpu_custom_call.1} parent=1 // pred_check_branch
      %18 = sbr.rel (0) target = $region5
    $region4: #{tpu_custom_call.1} parent=1 // pred_region
      %s19 = sadd.s32 0, 0
      %s20 = sld [smem:[#allocation4 + %s19]]
      %p21 = scmp.lt.s32.totalorder %s20, 0
      %s22 = scalar_select %p21, %s20, 0
      %s23 = smul.addr %s22, 8
      %s24 = scalar_lea.vmem %s3, %s23
      %s25 = sadd.s32 0, 0
      %s26 = sld [smem:[#allocation4 + %s25]]
    $region5: #{tpu_custom_call.1} parent=1 // pred_fallthru
      _
    // Predicated region
    $region6: #{tpu_custom_call.1} parent=1 // pred_check
      _
    $region7: #{tpu_custom_call.1} parent=1 // pred_check_branch
      %28 = sbr.rel (0) target = $region9
    $region8: #{tpu_custom_call.1} parent=1 // pred_region
      %s29 = sadd.s32 0, 0
      %s30 = sld [smem:[#allocation5 + %s29]]
      %32 = vsyncadd [#allocation8], 0
      %s33 = smul.addr %s30, 8
      %s34 = scalar_lea.hbm %s4, %s33
      %s36 = sshll.u32 %s34, 4
      %s37 = int_to_ptr.hbm [resolvable:$true] %s36
      %s38 = sshll.u32 [#allocation7], 4
      %s39 = int_to_ptr.vmem [resolvable:$true] %s38
      %41 = dma.hbm_to_vmem [thread:$0]  %s37, 128, %s39, [#allocation8]
    $region9: #{tpu_custom_call.1} parent=1 // pred_fallthru
      _
    // Predicated region
    $region10: #{tpu_custom_call.1} parent=1 // pred_check
      _
    $region11: #{tpu_custom_call.1} parent=1 // pred_check_branch
      %43 = sbr.rel (0) target = $region13
    $region12: #{tpu_custom_call.1} parent=1 // pred_region
      %s44 = sadd.s32 0, 0
      %s45 = sld [smem:[#allocation4 + %s44]]
      %p46 = scmp.lt.s32.totalorder %s45, 0
      %s47 = scalar_select %p46, %s45, 0
      %s48 = smul.addr %s47, 8
      %s49 = scalar_lea.vmem %s5, %s48
      %s50 = sadd.s32 0, 0
      %s51 = sld [smem:[#allocation4 + %s50]]
    $region13: #{tpu_custom_call.1} parent=1 // pred_fallthru
      _
    // Predicated region
    $region14: #{tpu_custom_call.1} parent=1 // pred_check
      _
    $region15: #{tpu_custom_call.1} parent=1 // pred_check_branch
      %53 = sbr.rel (0) target = $region17
    $region16: #{tpu_custom_call.1} parent=1 // pred_region
      %s54 = sadd.s32 0, 0
      %s55 = sld [smem:[#allocation5 + %s54]]
      %p56 = scmp.lt.s32.totalorder %s55, 0
      %s57 = scalar_select %p56, %s55, 0
      %s58 = scalar_lea.vmem %s6, %s57
      %s59 = sadd.s32 0, 0
      %s60 = sld [smem:[#allocation5 + %s59]]
    $region17: #{tpu_custom_call.1} parent=1 // pred_fallthru
      _
    // Predicated region
    $region18: #{tpu_custom_call.1} parent=1 // pred_check
      _
    $region19: #{tpu_custom_call.1} parent=1 // pred_check_branch
      %62 = sbr.rel (0) target = $region21
    $region20: #{tpu_custom_call.1} parent=1 // pred_region
      %64 = dma.done [#allocation8], 128
    $region21: #{tpu_custom_call.1} parent=1 // pred_fallthru
      _
    %s65 = sadd.s32 0, 0
    %s66 = sld [smem:[#allocation4 + %s65]]
    %p67 = scmp.lt.s32.totalorder %s66, 0
    %s68 = scalar_select %p67, %s66, 0
    %s69 = smul.addr %s68, 8
    %s70 = scalar_lea.vmem %s3, %s69
    %s71 = sadd.s32 0, 0
    %s72 = sld [smem:[#allocation4 + %s71]]
    %p73 = scmp.lt.s32.totalorder %s72, 0
    %s74 = scalar_select %p73, %s72, 0
    %s75 = smul.addr %s74, 8
    %s76 = scalar_lea.vmem %s5, %s75
    %s77 = sadd.s32 0, 0
    %s78 = sld [smem:[#allocation5 + %s77]]
    %p79 = scmp.lt.s32.totalorder %s78, 0
    %s80 = scalar_select %p79, %s78, 0
    %s81 = scalar_lea.vmem %s6, %s80
    %s82 = sadd.s32 0, 0
    %s83 = sld [smem:[#allocation4 + %s82]]
    %p84 = scmp.lt.s32.totalorder %s83, 0
    %s85 = scalar_select %p84, %s83, 0
    %s86 = smul.addr %s85, 8
    %s87 = scalar_lea.vmem %s3, %s86
    %s88 = sadd.s32 0, 0
    %s89 = sld [smem:[#allocation4 + %s88]]
    %s90 = sadd.s32 0, 0
    %s91 = sld [smem:[#allocation5 + %s90]]
    %s92 = sadd.s32 0, 0
    %s93 = sld [smem:[#allocation4 + %s92]]
    %p94 = scmp.lt.s32.totalorder %s93, 0
    %s95 = scalar_select %p94, %s93, 0
    %s96 = smul.addr %s95, 8
    %s97 = scalar_lea.vmem %s5, %s96
    %s98 = sadd.s32 0, 0
    %s99 = sld [smem:[#allocation4 + %s98]]
    %s100 = sadd.s32 0, 0
    %s101 = sld [smem:[#allocation5 + %s100]]
    %p102 = scmp.lt.s32.totalorder %s101, 0
    %s103 = scalar_select %p102, %s101, 0
    %s104 = scalar_lea.vmem %s6, %s103
    %s105 = sadd.s32 0, 0
    %s106 = sld [smem:[#allocation5 + %s105]]
    %p107 = scmp.eq.s32.totalorder 0, 0
    // Predicated region
    $region22: #{tpu_custom_call.1} parent=1 // pred_check
      %p108 = pneg %p107
    $region23: #{tpu_custom_call.1} parent=1 // pred_check_branch
      %110 = sbr.rel (%p108) target = $region25
    $region24: #{tpu_custom_call.1} parent=1 // pred_region
      %vm111 = vcmask 0
      %112 = vst.msk [vmem:[#allocation2] sm:$0x1] %vm111, 0.0
    $region25: #{tpu_custom_call.1} parent=1 // pred_fallthru
      _
    %v113 = vld [vmem:[%s87] sm:$0xff]
    %v114 = vld [vmem:[#allocation7] sm:$0xff]
    %vm115 = vcmask 261120
    %v117 = vsel %vm115, %v113, 0
    %v120 = vsel %vm115, %v114, 0
    %122 = vmatpush.xpose.msra.mxu0 0.0
    %123 = vmatpush.xpose.msra.mxu0 0.0
    %124 = vmatpush.xpose.msra.mxu0 0.0
    %125 = vmatpush.xpose.msra.mxu0 0.0
    %126 = vmatpush.xpose.msra.mxu0 0.0
    %127 = vmatpush.xpose.msra.mxu0 0.0
    %128 = vmatpush.xpose.msra.mxu0 0.0
    %129 = vmatpush.xpose.msra.mxu0 0.0
    %130 = vmatpush.xpose.msra.mxu0 0.0
    %131 = vmatpush.xpose.msra.mxu0 0.0
    %132 = vmatpush.xpose.msra.mxu0 0.0
    %133 = vmatpush.xpose.msra.mxu0 0.0
    %134 = vmatpush.xpose.msra.mxu0 0.0
    %135 = vmatpush.xpose.msra.mxu0 0.0
    %136 = vmatpush.xpose.msra.mxu0 0.0
    %137 = vmatpush.xpose.msra.mxu0 %v120
    %138 = vmatmul.f32.gmra.mxu0 %v117
    %v139 = vpop.f32.mrf.mxu0
    %v140 = vadd.f32 0.0, %v139
    %141 = vdwg.mxu0
    %v142 = vld [vmem:[%s97] sm:$0xff]
    %v143 = vld [vmem:[%s104] sm:$0x1]
    %145 = vset.pattern.permute.xlu0 0
    %146 = vperm.xlu0 %145, %v142
    %v147 = vpop.permute.xlu0 %146
    %v150 = vperm.slane %v143, 0
    %v152 = vadd.f32 %v147, %v150
    %v153 = vmul.f32 %v140, 2.0
    %v154 = vsub.f32 %v152, %v153
    %v155 = vmax.f32 %v154, 0.0
    %v156 = vadd.f32 %v155, 1.0
    %v157 = vlog2.pop %v156
    %v158 = vmul.f32 %v157, 0.6931472
    %s159 = sadd.s32 0, 0
    %s160 = sld [smem:[#allocation6 + %s159]]
    %v161 = vld [vmem:[#allocation2] sm:$0x1]
    %vm162 = vcmask 64512
    %v163 = vsel %vm162, %v158, 0.0
    %164 = vadd.xlane.f32.xlu0 %v163
    %v165 = vpop.xlane.xlu0 %164
    %v166 = vrot.slane %v165, 4
    %v167 = vadd.f32 %v165, %v166
    %v168 = vrot.slane %v167, 2
    %v169 = vadd.f32 %v167, %v168
    %v170 = vrot.slane %v169, 1
    %v171 = vadd.f32 %v169, %v170
    %s172 = vtos %v171
    %s173 = smul.f32 %s160, %s172
    %v174 = vstv %s173
    %v175 = vadd.f32 %v161, %v174
    %vm176 = vcmask 0
    %177 = vst.msk [vmem:[#allocation2] sm:$0x1] %vm176, %v175
    // Predicated region
    $region26: #{tpu_custom_call.1} parent=1 // pred_check
      %p178 = pneg %p107
    $region27: #{tpu_custom_call.1} parent=1 // pred_check_branch
      %180 = sbr.rel (%p178) target = $region29
    $region28: #{tpu_custom_call.1} parent=1 // pred_region
      %v181 = vld [vmem:[#allocation2] sm:$0x1]
      %v182 = vadd.f32 %v181, 0.0
      %s183 = vtos %v182
      %v184 = vlaneseq
      %v185 = vshrl.u32 %v184, 7
      %vm186 = vcmp.eq.s32.totalorder %v185, 0
      %v187 = vlaneseq
      %v188 = vand.u32 %v187, 127
      %vm189 = vcmp.eq.s32.totalorder %v188, 0
      %vm190 = vmand %vm186, %vm189
      %v191 = vstv %s183
      %v192 = vsel %vm190, %v191, 0.0
      %193 = vst [vmem:[#allocation10] sm:$0xff] %v192
    $region29: #{tpu_custom_call.1} parent=1 // pred_fallthru
      _
    // Predicated region
    $region30: #{tpu_custom_call.1} parent=1 // pred_check
      _
    $region31: #{tpu_custom_call.1} parent=1 // pred_check_branch
      %195 = sbr.rel (0) target = $region33
    $region32: #{tpu_custom_call.1} parent=1 // pred_region
      %197 = vsyncadd [#allocation9], 0
      %s199 = sshll.u32 [#allocation10], 4
      %s200 = int_to_ptr.vmem [resolvable:$true] %s199
      %s201 = sshll.u32 %s7, 4
      %s202 = int_to_ptr.hbm [resolvable:$true] %s201
      %204 = dma.vmem_to_hbm [thread:$0]  %s200, 128, %s202, [#allocation9]
    $region33: #{tpu_custom_call.1} parent=1 // pred_fallthru
      _
    // Predicated region
    $region34: #{tpu_custom_call.1} parent=1 // pred_check
      _
    $region35: #{tpu_custom_call.1} parent=1 // pred_check_branch
      %206 = sbr.rel (0) target = $region37
    $region36: #{tpu_custom_call.1} parent=1 // pred_region
      %208 = dma.done [#allocation9], 128
    $region37: #{tpu_custom_call.1} parent=1 // pred_fallthru
      _
    %209 = vsyncpa [#allocation8], 1
    %210 = vsyncpa [#allocation9], 1

</llo_original>
